<compile_context>
chip_gen: v5e
topology: v5e:2x2
jax: 0.10.0
libtpu: 0.0.40
codegen_flags: <defaults>
</compile_context>

<pallas_src>
import functools

import jax
import jax.numpy as jnp
from jax.experimental import pallas as pl
from jax.experimental.pallas import tpu as pltpu


def _label_smoothing_kernel(pred_ref, xt_ref, out_ref,
                            m_sc, l_sc, sx_sc, *,
                            smoothing: float, num_classes: int, rem):
    j = pl.program_id(1)
    nc = pl.num_programs(1)

    @pl.when(j == 0)
    def _init():
        m_sc[...] = jnp.full_like(m_sc, -jnp.inf)
        l_sc[...] = jnp.zeros_like(l_sc)
        sx_sc[...] = jnp.zeros_like(sx_sc)

    x = pred_ref[...].astype(jnp.float32)                # (TB, TC)

    def _accumulate(x_lse, x_sum):
        # Streaming (online) log-sum-exp + running sum of raw logits.
        # sum_c logp = sum_c x - C*lse ; logp_t = x_t - lse, so the full
        # logp array is never materialized.
        m_old = m_sc[...]
        m_new = jnp.maximum(m_old, jnp.max(x_lse, axis=-1, keepdims=True))
        l_sc[...] = (l_sc[...] * jnp.exp(m_old - m_new)
                     + jnp.sum(jnp.exp(x_lse - m_new), axis=-1, keepdims=True))
        m_sc[...] = m_new
        sx_sc[...] += jnp.sum(x_sum, axis=-1, keepdims=True)

    if rem is None:
        # Class extent is an exact multiple of the tile: no masking anywhere.
        _accumulate(x, x)
    else:
        # Only the final class tile contains (tc - rem) out-of-range columns.
        @pl.when(j != nc - 1)
        def _full_tile():
            _accumulate(x, x)

        @pl.when(j == nc - 1)
        def _partial_tile():
            valid = jax.lax.broadcasted_iota(jnp.int32, x.shape, 1) < rem
            _accumulate(jnp.where(valid, x, -jnp.inf),   # excluded from LSE
                        jnp.where(valid, x, 0.0))        # excluded from sum_x

    @pl.when(j == nc - 1)
    def _finalize():
        lse = m_sc[...] + jnp.log(l_sc[...])                       # (TB, 1)
        sum_logp = sx_sc[...] - jnp.float32(num_classes) * lse     # sum_c logp
        logp_t = xt_ref[...] - lse                                 # logp[target]
        off = jnp.float32(smoothing / (num_classes - 1))
        conf = jnp.float32(1.0 - smoothing)
        out_ref[...] = -(off * (sum_logp - logp_t) + conf * logp_t)


_VMEM_LIMIT_BYTES = 32 * 1024 * 1024   # safe on v5e / v6e / v7x
_MAX_BATCH_TILE = 512


def _round_up(x: int, m: int) -> int:
    return -(-x // m) * m


def _f32_tile_budget_bytes() -> int:
    # Size tiles on the f32 working set, generation-aware: 2-4 MiB tiles are
    # already ~85% of the HBM roofline, so stay small on v7x (64 MiB VMEM/TC)
    # and allow a bit more on v5e/v6e (128 MiB VMEM).
    try:
        cap = getattr(pltpu.get_tpu_info(), "vmem_capacity_bytes",
                      64 * 1024 * 1024)
    except Exception:
        cap = 64 * 1024 * 1024
    return 4 * 1024 * 1024 if cap >= 100 * 1024 * 1024 else 2 * 1024 * 1024


def _choose_tiles(B: int, C: int, sublane: int):
    budget_elems = _f32_tile_budget_bytes() // 4
    # >= 2 batch tiles whenever B permits so the "parallel" batch axis shards
    # across both TensorCores on v7x megacore (no effect on v5e/v6e).
    tb = _round_up(max(1, -(-B // 2)), sublane)
    tb = max(sublane, min(tb, _MAX_BATCH_TILE))
    if tb * C <= budget_elems:
        return tb, C                       # whole class axis in one block
    # Largest lane-dense class tile that keeps the f32 working set in budget.
    tc = max(128, (budget_elems // tb) // 128 * 128)
    return tb, tc


@functools.partial(jax.jit, static_argnums=(2,))
def label_smoothing_loss(pred: jax.Array, target: jax.Array,
                         smoothing: float) -> jax.Array:
    """pred: (B, C) float logits (fed in native dtype); target: (B,) int."""
    assert 0 <= smoothing < 1
    B, C = pred.shape
    assert C > 1, "label smoothing needs at least 2 classes"

    itemsize = jnp.dtype(pred.dtype).itemsize
    sublane = {1: 32, 2: 16}.get(itemsize, 8)
    tb, tc = _choose_tiles(B, C, sublane)
    nb = -(-B // tb)
    nc = -(-C // tc)
    rem = None if C % tc == 0 else C - (nc - 1) * tc

    # O(B) gather of the target logit in the wrapper; replaces the O(B*C)
    # iota/compare/select one-hot path that was in the kernel's hot loop.
    xt = jnp.take_along_axis(pred, target.astype(jnp.int32)[:, None],
                             axis=1).astype(jnp.float32)

    kernel = functools.partial(_label_smoothing_kernel,
                               smoothing=float(smoothing),
                               num_classes=C, rem=rem)

    # NOTE: pl.Buffered(3) on the pred spec is cheap insurance on v6e if the
    # profiler ever shows exposed DMA with these tile sizes.
    per_row = pl.pallas_call(
        kernel,
        out_shape=jax.ShapeDtypeStruct((B, 1), jnp.float32),
        grid_spec=pltpu.PrefetchScalarGridSpec(
            num_scalar_prefetch=0,
            grid=(nb, nc),                                    # reduction axis last
            in_specs=[
                pl.BlockSpec((tb, tc), lambda i, j: (i, j)),  # logits (native dtype)
                pl.BlockSpec((tb, 1), lambda i, j: (i, 0)),   # target logit (f32)
            ],
            out_specs=pl.BlockSpec((tb, 1), lambda i, j: (i, 0)),
            scratch_shapes=[pltpu.VMEM((tb, 1), jnp.float32)] * 3,  # m, l, sum_x
        ),
        compiler_params=pltpu.CompilerParams(
            dimension_semantics=("parallel", "arbitrary"),
            vmem_limit_bytes=_VMEM_LIMIT_BYTES,
        ),
        cost_estimate=pl.CostEstimate(
            flops=4 * B * C,
            transcendentals=B * C,
            bytes_accessed=B * C * itemsize + 12 * B,
        ),
    )(pred, xt)

    # Multiply by a precomputed 1/B instead of dividing.
    return jnp.sum(per_row[:, 0]) * jnp.float32(1.0 / B)


def _reference(pred, target, smoothing):
    # Pure-JAX reference mirroring the PyTorch module.
    logp = jax.nn.log_softmax(pred.astype(jnp.float32), axis=-1)
    B, C = pred.shape
    true_dist = jnp.full((B, C), smoothing / (C - 1), dtype=jnp.float32)
    true_dist = true_dist.at[jnp.arange(B), target].set(1.0 - smoothing)
    return jnp.mean(jnp.sum(-true_dist * logp, axis=-1))


if __name__ == "__main__":
    key = jax.random.PRNGKey(0)
    smoothing = 0.1
    k1, k2, k3, k4, k5, k6 = jax.random.split(key, 6)

    # Small demo matching the PyTorch module's (N, C) logits layout.
    B, C = 8, 32
    pred = jax.random.normal(k1, (B, C), dtype=jnp.float32)
    target = jax.random.randint(k2, (B,), 0, C, dtype=jnp.int32)
    loss = jax.block_until_ready(label_smoothing_loss(pred, target, smoothing))
    ref = _reference(pred, target, smoothing)
    assert jnp.allclose(loss, ref, atol=1e-5, rtol=1e-5), (loss, ref)

    # Native bf16 input (no host up-cast), batch not tile-aligned, C not a
    # multiple of 128 (full-class-block path, no padding copies anywhere).
    B2, C2 = 777, 1000
    pred2 = jax.random.normal(k3, (B2, C2), dtype=jnp.bfloat16)
    target2 = jax.random.randint(k4, (B2,), 0, C2, dtype=jnp.int32)
    loss2 = jax.block_until_ready(label_smoothing_loss(pred2, target2, smoothing))
    ref2 = _reference(pred2, target2, smoothing)
    assert jnp.allclose(loss2, ref2, atol=5e-3, rtol=5e-3), (loss2, ref2)

    # Realistic vocab size (not a 128-multiple): exercises the class-tiled
    # streaming online-LSE path plus the masked last class tile, with >= 2
    # batch tiles for v7x megacore.
    B3, C3 = 64, 50257
    pred3 = jax.random.normal(k5, (B3, C3), dtype=jnp.float32)
    target3 = jax.random.randint(k6, (B3,), 0, C3, dtype=jnp.int32)
    loss3 = jax.block_until_ready(label_smoothing_loss(pred3, target3, smoothing))
    ref3 = _reference(pred3, target3, smoothing)
    assert jnp.allclose(loss3, ref3, atol=1e-3, rtol=1e-3), (loss3, ref3)

    print("KERNEL_OK")
</pallas_src>

<mosaic_0001>
module attributes {stable_mosaic.version = 11 : i64} {
  func.func @_label_smoothing_kernel(%arg0: i32, %arg1: i32, %arg2: memref<8x32xf32, #tpu.memory_space<vmem>>, %arg3: memref<8x1xf32, #tpu.memory_space<vmem>>, %arg4: memref<8x1xf32, #tpu.memory_space<vmem>>, %arg5: memref<8x1xf32, #tpu.memory_space<vmem>>, %arg6: memref<8x1xf32, #tpu.memory_space<vmem>>, %arg7: memref<8x1xf32, #tpu.memory_space<vmem>>) attributes {dimension_semantics = [#tpu.dimension_semantics<parallel>, #tpu.dimension_semantics<arbitrary>], iteration_bounds = array<i64: 1, 1>, scalar_prefetch = 0 : i64, scratch_operands = 3 : i64, tpu.core_type = #tpu.core_type<tc>, window_params = [{transform_indices = @transform_0, window_bounds = array<i64: 8, 32>}, {transform_indices = @transform_1, window_bounds = array<i64: 8, 1>}, {transform_indices = @transform_2, window_bounds = array<i64: 8, 1>}]} {
    %c0_i32 = arith.constant 0 : i32
    %0 = arith.cmpi eq, %arg1, %c0_i32 : i32
    %1 = arith.extui %0 : i1 to i32
    %c0_i32_0 = arith.constant 0 : i32
    %2 = arith.cmpi ne, %1, %c0_i32_0 : i32
    scf.if %2 {
      %cst_18 = arith.constant 0xFF800000 : f32
      %28 = vector.broadcast %cst_18 : f32 to vector<8x1xf32>
      %c0_19 = arith.constant 0 : index
      %c0_20 = arith.constant 0 : index
      %29 = vector.load %arg5[%c0_19, %c0_20] : memref<8x1xf32, #tpu.memory_space<vmem>>, vector<8x1xf32>
      tpu.vector_store %arg5[%c0_19, %c0_20], %28 {strides = array<i32>} : memref<8x1xf32, #tpu.memory_space<vmem>>, vector<8x1xf32>,
      %cst_21 = arith.constant 0.000000e+00 : f32
      %30 = vector.broadcast %cst_21 : f32 to vector<8x1xf32>
      %c0_22 = arith.constant 0 : index
      %c0_23 = arith.constant 0 : index
      %31 = vector.load %arg6[%c0_22, %c0_23] : memref<8x1xf32, #tpu.memory_space<vmem>>, vector<8x1xf32>
      tpu.vector_store %arg6[%c0_22, %c0_23], %30 {strides = array<i32>} : memref<8x1xf32, #tpu.memory_space<vmem>>, vector<8x1xf32>,
      %cst_24 = arith.constant 0.000000e+00 : f32
      %32 = vector.broadcast %cst_24 : f32 to vector<8x1xf32>
      %c0_25 = arith.constant 0 : index
      %c0_26 = arith.constant 0 : index
      %33 = vector.load %arg7[%c0_25, %c0_26] : memref<8x1xf32, #tpu.memory_space<vmem>>, vector<8x1xf32>
      tpu.vector_store %arg7[%c0_25, %c0_26], %32 {strides = array<i32>} : memref<8x1xf32, #tpu.memory_space<vmem>>, vector<8x1xf32>,
    } else {
    }
    %c0 = arith.constant 0 : index
    %c0_1 = arith.constant 0 : index
    %3 = vector.load %arg2[%c0, %c0_1] : memref<8x32xf32, #tpu.memory_space<vmem>>, vector<8x32xf32>
    %c0_2 = arith.constant 0 : index
    %c0_3 = arith.constant 0 : index
    %4 = vector.load %arg5[%c0_2, %c0_3] : memref<8x1xf32, #tpu.memory_space<vmem>>, vector<8x1xf32>
    %cst = arith.constant dense<0xFF800000> : vector<8xf32>
    %5 = vector.multi_reduction <maximumf>, %3, %cst [1] : vector<8x32xf32> to vector<8xf32>
    %6 = vector.shape_cast %5 : vector<8xf32> to vector<8x1xf32>
    %7 = arith.maximumf %4, %6 : vector<8x1xf32>
    %c0_4 = arith.constant 0 : index
    %c0_5 = arith.constant 0 : index
    %8 = vector.load %arg6[%c0_4, %c0_5] : memref<8x1xf32, #tpu.memory_space<vmem>>, vector<8x1xf32>
    %9 = arith.subf %4, %7 : vector<8x1xf32>
    %10 = math.exp %9 : vector<8x1xf32>
    %11 = arith.mulf %8, %10 : vector<8x1xf32>
    %12 = vector.broadcast %7 : vector<8x1xf32> to vector<8x32xf32>
    %13 = arith.subf %3, %12 : vector<8x32xf32>
    %14 = math.exp %13 : vector<8x32xf32>
    %cst_6 = arith.constant dense<0.000000e+00> : vector<8xf32>
    %15 = vector.multi_reduction <add>, %14, %cst_6 [1] : vector<8x32xf32> to vector<8xf32>
    %16 = vector.shape_cast %15 : vector<8xf32> to vector<8x1xf32>
    %17 = arith.addf %11, %16 : vector<8x1xf32>
    %c0_7 = arith.constant 0 : index
    %c0_8 = arith.constant 0 : index
    %18 = vector.load %arg6[%c0_7, %c0_8] : memref<8x1xf32, #tpu.memory_space<vmem>>, vector<8x1xf32>
    tpu.vector_store %arg6[%c0_7, %c0_8], %17 {strides = array<i32>} : memref<8x1xf32, #tpu.memory_space<vmem>>, vector<8x1xf32>,
    %c0_9 = arith.constant 0 : index
    %c0_10 = arith.constant 0 : index
    %19 = vector.load %arg5[%c0_9, %c0_10] : memref<8x1xf32, #tpu.memory_space<vmem>>, vector<8x1xf32>
    tpu.vector_store %arg5[%c0_9, %c0_10], %7 {strides = array<i32>} : memref<8x1xf32, #tpu.memory_space<vmem>>, vector<8x1xf32>,
    %c0_11 = arith.constant 0 : index
    %c0_12 = arith.constant 0 : index
    %20 = vector.load %arg7[%c0_11, %c0_12] : memref<8x1xf32, #tpu.memory_space<vmem>>, vector<8x1xf32>
    %cst_13 = arith.constant dense<0.000000e+00> : vector<8xf32>
    %21 = vector.multi_reduction <add>, %3, %cst_13 [1] : vector<8x32xf32> to vector<8xf32>
    %22 = vector.shape_cast %21 : vector<8xf32> to vector<8x1xf32>
    %23 = arith.addf %20, %22 : vector<8x1xf32>
    %c0_14 = arith.constant 0 : index
    %c0_15 = arith.constant 0 : index
    %24 = vector.load %arg7[%c0_14, %c0_15] : memref<8x1xf32, #tpu.memory_space<vmem>>, vector<8x1xf32>
    tpu.vector_store %arg7[%c0_14, %c0_15], %23 {strides = array<i32>} : memref<8x1xf32, #tpu.memory_space<vmem>>, vector<8x1xf32>,
    %c0_i32_16 = arith.constant 0 : i32
    %25 = arith.cmpi eq, %arg1, %c0_i32_16 : i32
    %26 = arith.extui %25 : i1 to i32
    %c0_i32_17 = arith.constant 0 : i32
    %27 = arith.cmpi ne, %26, %c0_i32_17 : i32
    scf.if %27 {
      %c0_18 = arith.constant 0 : index
      %c0_19 = arith.constant 0 : index
      %28 = vector.load %arg5[%c0_18, %c0_19] : memref<8x1xf32, #tpu.memory_space<vmem>>, vector<8x1xf32>
      %c0_20 = arith.constant 0 : index
      %c0_21 = arith.constant 0 : index
      %29 = vector.load %arg6[%c0_20, %c0_21] : memref<8x1xf32, #tpu.memory_space<vmem>>, vector<8x1xf32>
      %30 = math.log %29 : vector<8x1xf32>
      %31 = arith.addf %28, %30 : vector<8x1xf32>
      %c0_22 = arith.constant 0 : index
      %c0_23 = arith.constant 0 : index
      %32 = vector.load %arg7[%c0_22, %c0_23] : memref<8x1xf32, #tpu.memory_space<vmem>>, vector<8x1xf32>
      %cst_24 = arith.constant 3.200000e+01 : f32
      %33 = vector.broadcast %cst_24 : f32 to vector<8x1xf32>
      %34 = arith.mulf %33, %31 : vector<8x1xf32>
      %35 = arith.subf %32, %34 : vector<8x1xf32>
      %c0_25 = arith.constant 0 : index
      %c0_26 = arith.constant 0 : index
      %36 = vector.load %arg3[%c0_25, %c0_26] : memref<8x1xf32, #tpu.memory_space<vmem>>, vector<8x1xf32>
      %37 = arith.subf %36, %31 : vector<8x1xf32>
      %38 = arith.subf %35, %37 : vector<8x1xf32>
      %cst_27 = arith.constant 0.0032258064 : f32
      %39 = vector.broadcast %cst_27 : f32 to vector<8x1xf32>
      %40 = arith.mulf %39, %38 : vector<8x1xf32>
      %cst_28 = arith.constant 0.899999976 : f32
      %41 = vector.broadcast %cst_28 : f32 to vector<8x1xf32>
      %42 = arith.mulf %41, %37 : vector<8x1xf32>
      %43 = arith.addf %40, %42 : vector<8x1xf32>
      %cst_29 = arith.constant 0.000000e+00 : f32
      %44 = vector.broadcast %cst_29 : f32 to vector<8x1xf32>
      %45 = arith.subf %44, %43 : vector<8x1xf32>
      %c0_30 = arith.constant 0 : index
      %c0_31 = arith.constant 0 : index
      %46 = vector.load %arg4[%c0_30, %c0_31] : memref<8x1xf32, #tpu.memory_space<vmem>>, vector<8x1xf32>
      tpu.vector_store %arg4[%c0_30, %c0_31], %45 {strides = array<i32>} : memref<8x1xf32, #tpu.memory_space<vmem>>, vector<8x1xf32>,
    } else {
    }
    return
  }
  func.func @transform_0(%arg0: i32, %arg1: i32) -> (i32, i32) {
    %c0_i32 = arith.constant 0 : i32
    return %arg0, %arg1 : i32, i32
  }
  func.func @transform_1(%arg0: i32, %arg1: i32) -> (i32, i32) {
    %c0_i32 = arith.constant 0 : i32
    %c0_i32_0 = arith.constant 0 : i32
    return %arg0, %c0_i32 : i32, i32
  }
  func.func @transform_2(%arg0: i32, %arg1: i32) -> (i32, i32) {
    %c0_i32 = arith.constant 0 : i32
    %c0_i32_0 = arith.constant 0 : i32
    return %arg0, %c0_i32 : i32, i32
  }
}

</mosaic_0001>

<llo_original>
// kernel: label_smoothing_loss.1
$region0: #{label_smoothing_loss.1}
  #allocation0 [shape = 'u32[]', space=smem, size = 0x4, offset = 0x4, fixed_abs, tag = 'smem constant byte address 0x4 - core index']
  #allocation1 [shape = 'u32[72,128]{1,0:T(1,128)}', space=vmem, size = 0x9000, scoped, tag = 'internal scratch']
  #allocation2 [shape = 'f32[8,1]{1,0:T(8,128)}', space=vmem, size = 0x1000, scoped, tag = 'scratch operand']
  #allocation3 [shape = 'f32[8,1]{1,0:T(8,128)}', space=vmem, size = 0x1000, scoped, tag = 'scratch operand']
  #allocation4 [shape = 'f32[8,1]{1,0:T(8,128)}', space=vmem, size = 0x1000, scoped, tag = 'scratch operand']
  %s0 = inlined_call_operand.vmem [shape: f32[8,32], index: 0, kind: input, shape index: {}]
  %s1 = inlined_call_operand.vmem [shape: f32[8,1], index: 1, kind: input, shape index: {}]
  %s2 = inlined_call_operand.vmem [shape: f32[8,1], index: 2, kind: output, shape index: {}]
  %s3 = sld [smem:[#allocation0]]
  $region26: #{label_smoothing_loss.1} parent=0
    _
  %s5 = ssub.s32 1, %s3
  %s6 = scalar_select 0, %s5, %s3
  // Predicated region
  $region2: #{label_smoothing_loss.1} parent=0 // pred_check
    _
  $region3: #{label_smoothing_loss.1} parent=0 // pred_check_branch
    %8 = sbr.rel (0) target = $region5
  $region4: #{label_smoothing_loss.1} parent=0 // pred_region
    _
  $region5: #{label_smoothing_loss.1} parent=0 // pred_fallthru
    _
  // Predicated region
  $region6: #{label_smoothing_loss.1} parent=0 // pred_check
    _
  $region7: #{label_smoothing_loss.1} parent=0 // pred_check_branch
    %10 = sbr.rel (0) target = $region9
  $region8: #{label_smoothing_loss.1} parent=0 // pred_region
    _
  $region9: #{label_smoothing_loss.1} parent=0 // pred_fallthru
    _
  %p11 = scmp.eq.s32.totalorder 0, 0
  // Predicated region
  $region10: #{label_smoothing_loss.1} parent=0 // pred_check
    %p12 = pneg %p11
  $region11: #{label_smoothing_loss.1} parent=0 // pred_check_branch
    %14 = sbr.rel (%p12) target = $region13
  $region12: #{label_smoothing_loss.1} parent=0 // pred_region
    %vm15 = vcmask 7168
    %16 = vst.msk [vmem:[#allocation2] sm:$0xff] %vm15, -inf
    %17 = vst.msk [vmem:[#allocation3] sm:$0xff] %vm15, 0.0
    %18 = vst.msk [vmem:[#allocation4] sm:$0xff] %vm15, 0.0
  $region13: #{label_smoothing_loss.1} parent=0 // pred_fallthru
    _
  %v19 = vld [vmem:[%s0] sm:$0xff]
  %v20 = vld [vmem:[#allocation2] sm:$0xff]
  %vm21 = vcmask 261120
  %v22 = vsel %vm21, %v19, -inf
  %23 = vmax.xlane.f32.xlu0 %v22
  %v24 = vpop.xlane.xlu0 %23
  %v25 = vmax.f32 %v20, %v24
  %v26 = vld [vmem:[#allocation3] sm:$0xff]
  %v27 = vsub.f32 %v20, %v25
  %v28 = vmul.f32 %v27, 1.442695
  %v29 = vpow.pop %v28
  %v30 = vmul.f32 %v26, %v29
  %32 = vset.pattern.permute.xlu0 0
  %33 = vperm.xlu0 %32, %v25
  %v34 = vpop.permute.xlu0 %33
  %v36 = vsub.f32 %v19, %v34
  %v37 = vmul.f32 %v36, 1.442695
  %v38 = vpow.pop %v37
  %v39 = vsel %vm21, %v38, 0.0
  %40 = vadd.xlane.f32.xlu0 %v39
  %v41 = vpop.xlane.xlu0 %40
  %v42 = vadd.f32 %v30, %v41
  %vm43 = vcmask 7168
  %44 = vst.msk [vmem:[#allocation3] sm:$0xff] %vm43, %v42
  %45 = vst.msk [vmem:[#allocation2] sm:$0xff] %vm43, %v25
  %v46 = vld [vmem:[#allocation4] sm:$0xff]
  %v47 = vsel %vm21, %v19, 0.0
  %48 = vadd.xlane.f32.xlu0 %v47
  %v49 = vpop.xlane.xlu0 %48
  %v50 = vadd.f32 %v46, %v49
  %51 = vst.msk [vmem:[#allocation4] sm:$0xff] %vm43, %v50
  // Predicated region
  $region14: #{label_smoothing_loss.1} parent=0 // pred_check
    %p52 = pneg %p11
  $region15: #{label_smoothing_loss.1} parent=0 // pred_check_branch
    %54 = sbr.rel (%p52) target = $region17
  $region16: #{label_smoothing_loss.1} parent=0 // pred_region
    %v55 = vld [vmem:[#allocation2] sm:$0xff]
    %v56 = vld [vmem:[#allocation3] sm:$0xff]
    %v57 = vlog2.pop %v56
    %v58 = vmul.f32 %v57, 0.6931472
    %v59 = vadd.f32 %v55, %v58
    %v60 = vld [vmem:[#allocation4] sm:$0xff]
    %v61 = vmul.f32 %v59, 32.0
    %v62 = vsub.f32 %v60, %v61
    %v63 = vld [vmem:[%s1] sm:$0xff]
    %v64 = vsub.f32 %v63, %v59
    %v65 = vsub.f32 %v62, %v64
    %v66 = vmul.f32 %v65, 0.0032258064
    %v67 = vmul.f32 %v64, 0.9
    %v68 = vadd.f32 %v66, %v67
    %v69 = vsub.f32 0.0, %v68
    %70 = vst.msk [vmem:[%s2] sm:$0xff] %vm43, %v69
  $region17: #{label_smoothing_loss.1} parent=0 // pred_fallthru
    _
  // Predicated region
  $region18: #{label_smoothing_loss.1} parent=0 // pred_check
    _
  $region19: #{label_smoothing_loss.1} parent=0 // pred_check_branch
    %72 = sbr.rel (0) target = $region21
  $region20: #{label_smoothing_loss.1} parent=0 // pred_region
    _
  $region21: #{label_smoothing_loss.1} parent=0 // pred_fallthru
    _
  // Predicated region
  $region22: #{label_smoothing_loss.1} parent=0 // pred_check
    _
  $region23: #{label_smoothing_loss.1} parent=0 // pred_check_branch
    %74 = sbr.rel (0) target = $region25
  $region24: #{label_smoothing_loss.1} parent=0 // pred_region
    _
  $region25: #{label_smoothing_loss.1} parent=0 // pred_fallthru
    _

</llo_original>
